<compile_context>
chip_gen: v5e
topology: v5e:2x2
jax: 0.10.0
libtpu: 0.0.40
codegen_flags: <defaults>
</compile_context>

<pallas_src>
import functools

import jax
import jax.numpy as jnp
from jax import lax
from jax.experimental import pallas as pl
from jax.experimental.pallas import tpu as pltpu


# ----------------------------------------------------------------------------
# VGG16 "features" architecture (torchvision indexing, layers 0..30).
# ----------------------------------------------------------------------------
def _vgg16_features_cfg():
    cfg = [64, 64, "M", 128, 128, "M", 256, 256, 256, "M",
           512, 512, 512, "M", 512, 512, 512, "M"]
    layers, cin = [], 3
    for v in cfg:
        if v == "M":
            layers.append(("pool",))
        else:
            layers.append(("conv", cin, v))
            layers.append(("relu",))
            cin = v
    return layers


VGG16_LAYERS = _vgg16_features_cfg()        # 31 entries, index 30 == last pool
LAYER_IDS = [2, 7, 12, 21, 30]              # feature taps (pre-ReLU conv outputs)


def _pick_tile(n, target):
    """Largest divisor of n that is <= target (row-tile height)."""
    t = max(1, min(n, target))
    while n % t:
        t -= 1
    return t


def _round_up(x, m):
    return ((x + m - 1) // m) * m


# ----------------------------------------------------------------------------
# conv3x3 + bias, with optional fused input-ReLU and output-ReLU
# ----------------------------------------------------------------------------
def _conv3x3_kernel(xc_ref, xt_ref, xb_ref, w_ref, b_ref, o_ref, *,
                    relu_in, relu_out):
    # xc_ref: (1, TH, W, Cin)   centre rows of this tile
    # xt_ref: (1, 1, W, Cin)    row above the tile (masked to 0 on first tile)
    # xb_ref: (1, 1, W, Cin)    row below the tile (masked to 0 on last tile)
    # w_ref : (3, 3*Cin, Cout)  per-dx weights, dy-major on the K axis, bf16
    # b_ref : (1, Cout)
    # o_ref : (1, TH, W, Cout)
    _, TH, W, Cout = o_ref.shape
    Cin = xc_ref.shape[3]
    # Padded width, rounded up so the (TH, Wp, *) -> (TH*Wp, *) reshape is a
    # layout-preserving collapse for bf16 (sublane tile 16).
    Wp = _round_up(W + 2, 16)

    i = pl.program_id(1)
    not_first = (i > 0).astype(jnp.float32)
    not_last = (i < pl.num_programs(1) - 1).astype(jnp.float32)
    top = xt_ref[0] * not_first          # zero halo row at the image top
    bot = xb_ref[0] * not_last           # zero halo row at the image bottom

    rows = jnp.concatenate([top, xc_ref[0], bot], axis=0)       # (TH+2, W, Cin)
    if relu_in:                          # deferred ReLU of the previous tap conv
        rows = jnp.maximum(rows, 0.0)
    rows = rows.astype(jnp.bfloat16)     # bf16 MXU operands, f32 accumulation

    zl = jnp.zeros((TH + 2, 1, Cin), jnp.bfloat16)
    zr = jnp.zeros((TH + 2, Wp - W - 1, Cin), jnp.bfloat16)
    xpad = jnp.concatenate([zl, rows, zr], axis=1)              # (TH+2, Wp, Cin)

    # dy-im2col: one K = 3*Cin operand over the full padded width -> 3 long
    # matmuls (good MXU cadence) instead of 9 short, misaligned slice+matmuls.
    patch = jnp.concatenate([xpad[0:TH], xpad[1:TH + 1], xpad[2:TH + 2]],
                            axis=-1)                             # (TH, Wp, 3*Cin)
    patch = patch.reshape(TH * Wp, 3 * Cin)

    acc = jnp.zeros((TH, W, Cout), jnp.float32)
    for dx in range(3):                                          # statically unrolled
        y = jnp.dot(patch, w_ref[dx], preferred_element_type=jnp.float32)
        acc = acc + y.reshape(TH, Wp, Cout)[:, dx:dx + W, :]

    out = acc + b_ref[...].reshape(1, 1, Cout)
    if relu_out:                         # fused ReLU epilogue (non-tap convs)
        out = jnp.maximum(out, 0.0)
    o_ref[...] = out[jnp.newaxis]


def conv3x3(x, wdx, bias, *, relu_in, relu_out, row_tile):
    N, H, W, Cin = x.shape
    Cout = wdx.shape[-1]
    TH = _pick_tile(H, row_tile)
    T = H // TH
    kernel = functools.partial(_conv3x3_kernel, relu_in=relu_in,
                               relu_out=relu_out)
    return pl.pallas_call(
        kernel,
        out_shape=jax.ShapeDtypeStruct((N, H, W, Cout), jnp.float32),
        grid=(N, T),
        in_specs=[
            # centre rows of the tile
            pl.BlockSpec((1, TH, W, Cin), lambda n, i: (n, i, 0, 0)),
            # 1-row halos: clamped row index, masked in-kernel at the borders
            pl.BlockSpec((1, 1, W, Cin),
                         lambda n, i: (n, jnp.maximum(i * TH - 1, 0), 0, 0)),
            pl.BlockSpec((1, 1, W, Cin),
                         lambda n, i: (n, jnp.minimum(i * TH + TH, H - 1), 0, 0)),
            # weights / bias resident across the whole grid
            pl.BlockSpec((3, 3 * Cin, Cout), lambda n, i: (0, 0, 0)),
            pl.BlockSpec((1, Cout), lambda n, i: (0, 0)),
        ],
        out_specs=pl.BlockSpec((1, TH, W, Cout), lambda n, i: (n, i, 0, 0)),
        compiler_params=pltpu.CompilerParams(
            dimension_semantics=("parallel", "parallel")),
    )(x, x, x, wdx, bias)


# ----------------------------------------------------------------------------
# fused (optional ReLU) + 2x2 max-pool, stride 2
# ----------------------------------------------------------------------------
def _maxpool2x2_kernel(x_ref, o_ref, *, relu_in):
    x = x_ref[0]                                   # (2*THo, W, C)
    if relu_in:
        x = jnp.maximum(x, 0.0)
    r = jnp.maximum(x[0::2], x[1::2])              # adjacent-row max (cheap axis)
    o = jnp.maximum(r[:, 0::2, :], r[:, 1::2, :])  # (THo, W//2, C)
    o_ref[...] = o[jnp.newaxis]


def maxpool2x2(x, *, relu_in, row_tile):
    N, H, W, C = x.shape
    Ho, Wo = H // 2, W // 2
    THo = _pick_tile(Ho, row_tile)
    T = Ho // THo
    kernel = functools.partial(_maxpool2x2_kernel, relu_in=relu_in)
    return pl.pallas_call(
        kernel,
        out_shape=jax.ShapeDtypeStruct((N, Ho, Wo, C), jnp.float32),
        grid=(N, T),
        in_specs=[pl.BlockSpec((1, 2 * THo, W, C), lambda n, i: (n, i, 0, 0))],
        out_specs=pl.BlockSpec((1, THo, Wo, C), lambda n, i: (n, i, 0, 0)),
        compiler_params=pltpu.CompilerParams(
            dimension_semantics=("parallel", "parallel")),
    )(x)


# ----------------------------------------------------------------------------
# tiled sum(|f1 - f2|) over a batch-stacked feature tensor [f1; f2]
# ----------------------------------------------------------------------------
def _absdiff_partial_kernel(a_ref, b_ref, o_ref):
    # a_ref/b_ref: (1, TH, W, C) tiles of f1 / f2; o_ref: (n_pairs, T) in SMEM.
    o_ref[pl.program_id(0), pl.program_id(1)] = jnp.sum(
        jnp.abs(a_ref[...] - b_ref[...]))


def absdiff_sum(f_stacked, n_pairs, *, row_tile):
    B, H, W, C = f_stacked.shape           # B == 2 * n_pairs (f1 then f2)
    TH = _pick_tile(H, row_tile)
    T = H // TH
    partials = pl.pallas_call(
        _absdiff_partial_kernel,
        out_shape=jax.ShapeDtypeStruct((n_pairs, T), jnp.float32),
        grid=(n_pairs, T),
        in_specs=[
            pl.BlockSpec((1, TH, W, C), lambda n, i: (n, i, 0, 0)),
            pl.BlockSpec((1, TH, W, C), lambda n, i: (n + n_pairs, i, 0, 0)),
        ],
        out_specs=pl.BlockSpec(memory_space=pltpu.MemorySpace.SMEM),
        compiler_params=pltpu.CompilerParams(
            dimension_semantics=("arbitrary", "arbitrary")),
    )(f_stacked, f_stacked)
    return jnp.sum(partials)


# ----------------------------------------------------------------------------
# _VGGDistance port
# ----------------------------------------------------------------------------
class VGGDistancePallas:
    """Pallas/TPU port of _VGGDistance.

    Weights are synthetic deterministic He-style init (no checkpoint load).
    Semantics match the torch forward: per-level sum(|f1 - f2|) of pre-ReLU
    VGG16 feature maps at layer ids [2, 7, 12, 21, 30][:levels], with the
    stateful `factors` bookkeeping and optional use_factors reweighting.
    The factors update (torch .item()) forces one device->host sync per call,
    so __call__ itself is not jittable as a whole (same as the torch module).
    """

    def __init__(self, levels, key, row_tile=32):
        assert 1 <= levels <= 5
        self.levels = levels
        self.layer_ids = LAYER_IDS[:levels]
        self.id_max = self.layer_ids[-1] + 1
        self.factors = [0.0] * (levels + 1)
        self.eps = 1e-08
        self.row_tile = row_tile
        self.params = {}
        for idx in range(self.id_max):
            layer = VGG16_LAYERS[idx]
            if layer[0] == "conv":
                _, cin, cout = layer
                key, kw, kb = jax.random.split(key, 3)
                std = (2.0 / (9 * cin)) ** 0.5
                w_oihw = std * jax.random.normal(kw, (cout, cin, 3, 3), jnp.float32)
                bias = 0.01 * jax.random.normal(kb, (cout,), jnp.float32)
                # OIHW -> HWIO (dy, dx, cin, cout) -> per-dx (3*Cin, Cout),
                # rows ordered dy-major to match the kernel's dy-im2col patch.
                w_hwio = jnp.transpose(w_oihw, (2, 3, 1, 0))
                wdx = jnp.transpose(w_hwio, (1, 0, 2, 3)).reshape(3, 3 * cin, cout)
                self.params[idx] = (wdx.astype(jnp.bfloat16),
                                    bias.reshape(1, cout))

    def _features(self, z_nhwc):
        feats = []
        z = z_nhwc
        pending_relu = False
        idx = 0
        while idx < self.id_max:
            kind = VGG16_LAYERS[idx][0]
            if kind == "conv":
                wdx, b = self.params[idx]
                is_tap = idx in self.layer_ids
                z = conv3x3(z, wdx, b, relu_in=pending_relu,
                            relu_out=not is_tap, row_tile=self.row_tile)
                pending_relu = False
                if is_tap:
                    feats.append(z)          # pre-ReLU tap, like torch
                    pending_relu = True      # ReLU deferred into the consumer
                idx += 2                     # skip the fused / deferred ReLU
            elif kind == "pool":
                z = maxpool2x2(z, relu_in=pending_relu, row_tile=self.row_tile)
                pending_relu = False
                if idx in self.layer_ids:
                    feats.append(z)
                idx += 1
            else:
                raise AssertionError("unexpected standalone relu layer")
        return feats

    def __call__(self, I1, I2, use_factors=False):
        # I1, I2: NCHW float32, exactly like the PyTorch module.
        n = I1.shape[0]
        x1 = jnp.transpose(I1, (0, 2, 3, 1)).astype(jnp.float32)
        x2 = jnp.transpose(I2, (0, 2, 3, 1)).astype(jnp.float32)
        x = jnp.concatenate([x1, x2], axis=0)     # one feature pass for both
        sum_factors = sum(self.factors)

        feats = self._features(x)
        level_sums = [absdiff_sum(f, n, row_tile=self.row_tile) for f in feats]
        # Single device->host sync for all levels (torch does one per level).
        sums_host = jax.device_get(jnp.stack(level_sums))

        loss = jnp.float32(0.0)
        for i in range(self.levels):
            self.factors[i] += float(sums_host[i])    # .item() equivalent
            scale = 1.0
            if use_factors:
                scale = sum_factors / (self.factors[i] + self.eps)
            loss = loss + jnp.float32(scale) * level_sums[i]
        return loss


# ----------------------------------------------------------------------------
# Pure-JAX reference (for correctness check only)
# ----------------------------------------------------------------------------
def _reference_loss(dist, I1, I2):
    def feats(x_nchw):
        z = jnp.transpose(x_nchw, (0, 2, 3, 1)).astype(jnp.float32)
        out = []
        for idx in range(dist.id_max):
            layer = VGG16_LAYERS[idx]
            if layer[0] == "conv":
                wdx, b = dist.params[idx]
                cin, cout = layer[1], layer[2]
                w_hwio = jnp.transpose(
                    wdx.astype(jnp.float32).reshape(3, 3, cin, cout),
                    (1, 0, 2, 3))                       # (dy, dx, cin, cout)
                z = lax.conv_general_dilated(
                    z, w_hwio, (1, 1), "SAME",
                    dimension_numbers=("NHWC", "HWIO", "NHWC")) + b.reshape(cout)
            elif layer[0] == "relu":
                z = jnp.maximum(z, 0.0)
            else:
                N, H, W, C = z.shape
                z = z.reshape(N, H // 2, 2, W // 2, 2, C).max(axis=(2, 4))
            if idx in dist.layer_ids:
                out.append(z)
        return out

    f1, f2 = feats(I1), feats(I2)
    return sum(jnp.sum(jnp.abs(a - b)) for a, b in zip(f1, f2))


if __name__ == "__main__":
    key = jax.random.PRNGKey(0)
    k1, k2, kw = jax.random.split(key, 3)
    # NCHW inputs, as the PyTorch module expects (3 channels for VGG16).
    I1 = jax.random.normal(k1, (2, 3, 16, 16), jnp.float32)
    I2 = jax.random.normal(k2, (2, 3, 16, 16), jnp.float32)

    # row_tile=8 -> two row tiles at 16x16, exercising the halo masking path.
    dist = VGGDistancePallas(levels=2, key=kw, row_tile=8)
    loss = jax.block_until_ready(dist(I1, I2))

    ref = jax.block_until_ready(_reference_loss(dist, I1, I2))
    rel_err = abs(float(loss) - float(ref)) / (abs(float(ref)) + 1e-8)
    assert rel_err < 3e-2, f"mismatch: pallas={float(loss)} ref={float(ref)} rel={rel_err}"

    # exercise the use_factors / stateful-factor path once as well
    loss2 = jax.block_until_ready(dist(I1, I2, use_factors=True))
    assert bool(jnp.isfinite(loss2))

    print("KERNEL_OK")
</pallas_src>

<mosaic_0001>
module attributes {stable_mosaic.version = 11 : i64} {
  func.func @_conv3x3_kernel(%arg0: i32, %arg1: i32, %arg2: memref<1x8x16x3xf32, #tpu.memory_space<vmem>>, %arg3: memref<1x1x16x3xf32, #tpu.memory_space<vmem>>, %arg4: memref<1x1x16x3xf32, #tpu.memory_space<vmem>>, %arg5: memref<3x9x64xbf16, #tpu.memory_space<vmem>>, %arg6: memref<1x64xf32, #tpu.memory_space<vmem>>, %arg7: memref<1x8x16x64xf32, #tpu.memory_space<vmem>>) attributes {dimension_semantics = [#tpu.dimension_semantics<parallel>, #tpu.dimension_semantics<parallel>], iteration_bounds = array<i64: 4, 2>, scalar_prefetch = 0 : i64, scratch_operands = 0 : i64, tpu.core_type = #tpu.core_type<tc>, window_params = [{transform_indices = @transform_0, window_bounds = array<i64: 1, 8, 16, 3>}, {transform_indices = @transform_1, window_bounds = array<i64: 1, 1, 16, 3>}, {transform_indices = @transform_2, window_bounds = array<i64: 1, 1, 16, 3>}, {pipeline_mode = #tpu.pipeline_mode<synchronous>, transform_indices = @transform_3, window_bounds = array<i64: 3, 9, 64>}, {pipeline_mode = #tpu.pipeline_mode<synchronous>, transform_indices = @transform_4, window_bounds = array<i64: 1, 64>}, {transform_indices = @transform_5, window_bounds = array<i64: 1, 8, 16, 64>}]} {
    %c0_i32 = arith.constant 0 : i32
    %0 = arith.cmpi sgt, %arg1, %c0_i32 : i32
    %1 = arith.extui %0 : i1 to i32
    %2 = arith.sitofp %1 : i32 to f32
    %c1_i32 = arith.constant 1 : i32
    %3 = arith.cmpi slt, %arg1, %c1_i32 : i32
    %4 = arith.extui %3 : i1 to i32
    %5 = arith.sitofp %4 : i32 to f32
    %c0 = arith.constant 0 : index
    %c0_0 = arith.constant 0 : index
    %c0_1 = arith.constant 0 : index
    %c0_2 = arith.constant 0 : index
    %6 = vector.load %arg3[%c0, %c0_0, %c0_1, %c0_2] : memref<1x1x16x3xf32, #tpu.memory_space<vmem>>, vector<1x1x16x3xf32>
    %7 = vector.shape_cast %6 : vector<1x1x16x3xf32> to vector<1x16x3xf32>
    %8 = vector.broadcast %2 : f32 to vector<1x16x3xf32>
    %9 = arith.mulf %7, %8 : vector<1x16x3xf32>
    %c0_3 = arith.constant 0 : index
    %c0_4 = arith.constant 0 : index
    %c0_5 = arith.constant 0 : index
    %c0_6 = arith.constant 0 : index
    %10 = vector.load %arg4[%c0_3, %c0_4, %c0_5, %c0_6] : memref<1x1x16x3xf32, #tpu.memory_space<vmem>>, vector<1x1x16x3xf32>
    %11 = vector.shape_cast %10 : vector<1x1x16x3xf32> to vector<1x16x3xf32>
    %12 = vector.broadcast %5 : f32 to vector<1x16x3xf32>
    %13 = arith.mulf %11, %12 : vector<1x16x3xf32>
    %c0_7 = arith.constant 0 : index
    %c0_8 = arith.constant 0 : index
    %c0_9 = arith.constant 0 : index
    %c0_10 = arith.constant 0 : index
    %14 = vector.load %arg2[%c0_7, %c0_8, %c0_9, %c0_10] : memref<1x8x16x3xf32, #tpu.memory_space<vmem>>, vector<1x8x16x3xf32>
    %15 = vector.shape_cast %14 : vector<1x8x16x3xf32> to vector<8x16x3xf32>
    %16 = tpu.concatenate %9, %15, %13 in 0 : vector<1x16x3xf32>, vector<8x16x3xf32>, vector<1x16x3xf32> -> vector<10x16x3xf32>
    %17 = arith.truncf %16 : vector<10x16x3xf32> to vector<10x16x3xbf16>
    %cst = arith.constant 0.000000e+00 : bf16
    %18 = vector.broadcast %cst : bf16 to vector<10x1x3xbf16>
    %cst_11 = arith.constant 0.000000e+00 : bf16
    %19 = vector.broadcast %cst_11 : bf16 to vector<10x15x3xbf16>
    %20 = tpu.concatenate %18, %17, %19 in 1 : vector<10x1x3xbf16>, vector<10x16x3xbf16>, vector<10x15x3xbf16> -> vector<10x32x3xbf16>
    %21 = vector.extract_strided_slice %20 {offsets = [0, 0, 0], sizes = [8, 32, 3], strides = [1, 1, 1]} : vector<10x32x3xbf16> to vector<8x32x3xbf16>
    %22 = vector.extract_strided_slice %20 {offsets = [1, 0, 0], sizes = [8, 32, 3], strides = [1, 1, 1]} : vector<10x32x3xbf16> to vector<8x32x3xbf16>
    %23 = vector.extract_strided_slice %20 {offsets = [2, 0, 0], sizes = [8, 32, 3], strides = [1, 1, 1]} : vector<10x32x3xbf16> to vector<8x32x3xbf16>
    %24 = tpu.concatenate %21, %22, %23 in 2 : vector<8x32x3xbf16>, vector<8x32x3xbf16>, vector<8x32x3xbf16> -> vector<8x32x9xbf16>
    %25 = vector.shape_cast %24 : vector<8x32x9xbf16> to vector<256x9xbf16>
    %cst_12 = arith.constant 0.000000e+00 : f32
    %26 = vector.broadcast %cst_12 : f32 to vector<8x16x64xf32>
    %c0_13 = arith.constant 0 : index
    %c0_14 = arith.constant 0 : index
    %c0_15 = arith.constant 0 : index
    %27 = vector.load %arg5[%c0_13, %c0_14, %c0_15] : memref<3x9x64xbf16, #tpu.memory_space<vmem>>, vector<1x9x64xbf16>
    %28 = vector.shape_cast %27 : vector<1x9x64xbf16> to vector<9x64xbf16>
    %cst_16 = arith.constant dense<0.000000e+00> : vector<256x64xf32>
    %29 = tpu.matmul %25, %28, %cst_16 {dimension_numbers = #tpu.dot_dimension_numbers<[1], [0], [0], [1], [0, 0, 1, 1], [], []>} : vector<256x9xbf16>, vector<9x64xbf16>, vector<256x64xf32> -> vector<256x64xf32>
    %30 = vector.shape_cast %29 : vector<256x64xf32> to vector<8x32x64xf32>
    %31 = vector.extract_strided_slice %30 {offsets = [0, 0, 0], sizes = [8, 16, 64], strides = [1, 1, 1]} : vector<8x32x64xf32> to vector<8x16x64xf32>
    %32 = arith.addf %26, %31 : vector<8x16x64xf32>
    %c1 = arith.constant 1 : index
    %c0_17 = arith.constant 0 : index
    %c0_18 = arith.constant 0 : index
    %33 = vector.load %arg5[%c1, %c0_17, %c0_18] : memref<3x9x64xbf16, #tpu.memory_space<vmem>>, vector<1x9x64xbf16>
    %34 = vector.shape_cast %33 : vector<1x9x64xbf16> to vector<9x64xbf16>
    %cst_19 = arith.constant dense<0.000000e+00> : vector<256x64xf32>
    %35 = tpu.matmul %25, %34, %cst_19 {dimension_numbers = #tpu.dot_dimension_numbers<[1], [0], [0], [1], [0, 0, 1, 1], [], []>} : vector<256x9xbf16>, vector<9x64xbf16>, vector<256x64xf32> -> vector<256x64xf32>
    %36 = vector.shape_cast %35 : vector<256x64xf32> to vector<8x32x64xf32>
    %37 = vector.extract_strided_slice %36 {offsets = [0, 1, 0], sizes = [8, 16, 64], strides = [1, 1, 1]} : vector<8x32x64xf32> to vector<8x16x64xf32>
    %38 = arith.addf %32, %37 : vector<8x16x64xf32>
    %c2 = arith.constant 2 : index
    %c0_20 = arith.constant 0 : index
    %c0_21 = arith.constant 0 : index
    %39 = vector.load %arg5[%c2, %c0_20, %c0_21] : memref<3x9x64xbf16, #tpu.memory_space<vmem>>, vector<1x9x64xbf16>
    %40 = vector.shape_cast %39 : vector<1x9x64xbf16> to vector<9x64xbf16>
    %cst_22 = arith.constant dense<0.000000e+00> : vector<256x64xf32>
    %41 = tpu.matmul %25, %40, %cst_22 {dimension_numbers = #tpu.dot_dimension_numbers<[1], [0], [0], [1], [0, 0, 1, 1], [], []>} : vector<256x9xbf16>, vector<9x64xbf16>, vector<256x64xf32> -> vector<256x64xf32>
    %42 = vector.shape_cast %41 : vector<256x64xf32> to vector<8x32x64xf32>
    %43 = vector.extract_strided_slice %42 {offsets = [0, 2, 0], sizes = [8, 16, 64], strides = [1, 1, 1]} : vector<8x32x64xf32> to vector<8x16x64xf32>
    %44 = arith.addf %38, %43 : vector<8x16x64xf32>
    %c0_23 = arith.constant 0 : index
    %c0_24 = arith.constant 0 : index
    %45 = vector.load %arg6[%c0_23, %c0_24] : memref<1x64xf32, #tpu.memory_space<vmem>>, vector<1x64xf32>
    %46 = vector.shape_cast %45 : vector<1x64xf32> to vector<1x1x64xf32>
    %47 = vector.broadcast %46 : vector<1x1x64xf32> to vector<8x16x64xf32>
    %48 = arith.addf %44, %47 : vector<8x16x64xf32>
    %cst_25 = arith.constant 0.000000e+00 : f32
    %49 = vector.broadcast %cst_25 : f32 to vector<8x16x64xf32>
    %50 = arith.maximumf %48, %49 : vector<8x16x64xf32>
    %51 = vector.shape_cast %50 : vector<8x16x64xf32> to vector<1x8x16x64xf32>
    %c0_26 = arith.constant 0 : index
    %c0_27 = arith.constant 0 : index
    %c0_28 = arith.constant 0 : index
    %c0_29 = arith.constant 0 : index
    %52 = vector.load %arg7[%c0_26, %c0_27, %c0_28, %c0_29] : memref<1x8x16x64xf32, #tpu.memory_space<vmem>>, vector<1x8x16x64xf32>
    tpu.vector_store %arg7[%c0_26, %c0_27, %c0_28, %c0_29], %51 {strides = array<i32>} : memref<1x8x16x64xf32, #tpu.memory_space<vmem>>, vector<1x8x16x64xf32>,
    return
  }
  func.func @transform_0(%arg0: i32, %arg1: i32) -> (i32, i32, i32, i32) {
    %c0_i32 = arith.constant 0 : i32
    %c0_i32_0 = arith.constant 0 : i32
    %c0_i32_1 = arith.constant 0 : i32
    return %arg0, %arg1, %c0_i32, %c0_i32_0 : i32, i32, i32, i32
  }
  func.func @transform_1(%arg0: i32, %arg1: i32) -> (i32, i32, i32, i32) {
    %c8_i32 = arith.constant 8 : i32
    %0 = arith.muli %arg1, %c8_i32 : i32
    %c1_i32 = arith.constant 1 : i32
    %1 = arith.subi %0, %c1_i32 : i32
    %c0_i32 = arith.constant 0 : i32
    %2 = arith.maxsi %1, %c0_i32 : i32
    %c0_i32_0 = arith.constant 0 : i32
    %c0_i32_1 = arith.constant 0 : i32
    %c0_i32_2 = arith.constant 0 : i32
    return %arg0, %2, %c0_i32_0, %c0_i32_1 : i32, i32, i32, i32
  }
  func.func @transform_2(%arg0: i32, %arg1: i32) -> (i32, i32, i32, i32) {
    %c8_i32 = arith.constant 8 : i32
    %0 = arith.muli %arg1, %c8_i32 : i32
    %c8_i32_0 = arith.constant 8 : i32
    %1 = arith.addi %0, %c8_i32_0 : i32
    %c15_i32 = arith.constant 15 : i32
    %2 = arith.minsi %1, %c15_i32 : i32
    %c0_i32 = arith.constant 0 : i32
    %c0_i32_1 = arith.constant 0 : i32
    %c0_i32_2 = arith.constant 0 : i32
    return %arg0, %2, %c0_i32, %c0_i32_1 : i32, i32, i32, i32
  }
  func.func @transform_3(%arg0: i32, %arg1: i32) -> (i32, i32, i32) {
    %c0_i32 = arith.constant 0 : i32
    %c0_i32_0 = arith.constant 0 : i32
    %c0_i32_1 = arith.constant 0 : i32
    %c0_i32_2 = arith.constant 0 : i32
    return %c0_i32, %c0_i32_0, %c0_i32_1 : i32, i32, i32
  }
  func.func @transform_4(%arg0: i32, %arg1: i32) -> (i32, i32) {
    %c0_i32 = arith.constant 0 : i32
    %c0_i32_0 = arith.constant 0 : i32
    %c0_i32_1 = arith.constant 0 : i32
    return %c0_i32, %c0_i32_0 : i32, i32
  }
  func.func @transform_5(%arg0: i32, %arg1: i32) -> (i32, i32, i32, i32) {
    %c0_i32 = arith.constant 0 : i32
    %c0_i32_0 = arith.constant 0 : i32
    %c0_i32_1 = arith.constant 0 : i32
    return %arg0, %arg1, %c0_i32, %c0_i32_0 : i32, i32, i32, i32
  }
}

</mosaic_0001>

<llo_original>
// kernel: tpu_custom_call.1
$region0: #{tpu_custom_call.1}
  #allocation0 [shape = 'u32[]', space=smem, size = 0x4, offset = 0x4, fixed_abs, tag = 'smem constant byte address 0x4 - core index']
  #allocation1 [shape = 'u32[72,128]{1,0:T(1,128)}', space=vmem, size = 0x9000, scoped, tag = 'internal scratch']
  %s0 = inlined_call_operand.vmem [shape: f32[4,16,16,3], index: 0, kind: input, shape index: {}]
  %s1 = inlined_call_operand.vmem [shape: f32[4,16,16,3], index: 1, kind: input, shape index: {}]
  %s2 = inlined_call_operand.vmem [shape: f32[4,16,16,3], index: 2, kind: input, shape index: {}]
  %s3 = inlined_call_operand.vmem [shape: bf16[3,9,64], index: 3, kind: input, shape index: {}]
  %s4 = inlined_call_operand.vmem [shape: f32[1,64], index: 4, kind: input, shape index: {}]
  %s5 = inlined_call_operand.hbm [shape: f32[4,16,16,64], index: 5, kind: output, shape index: {}]
  %s6 = sld [smem:[#allocation0]]
  $region53: #{tpu_custom_call.1} parent=0
    _
  %s8 = ssub.s32 1, %s6
  %s9 = scalar_select 0, %s8, %s6
  $region1: #{tpu_custom_call.1} parent=0
    #allocation2 [shape = 'u8[131072]{0}', space=vmem, size = 0x20000, scoped, tag = 'output window, operand 0']
    #allocation3 [shape = 's32[2]{0}', space=sflag, size = 0x8, scoped, tag = 'scoped memory for tpu_custom_call.1']
    %10 = vsyncpa [#allocation3], 0
    %s11 = scalar_lea.sflag [#allocation3], 1
    %12 = vsyncpa %s11, 0
    loop: start=0, step=1, limit=10
    $region2: #{tpu_custom_call.1} parent=1 // loop_pre_header
      _
    $region3: #{tpu_custom_call.1} parent=1 // loop_header
      %s14 = sphi 0, %s18
      %p15 = scmp.ge.s32.totalorder %s14, 10
      %s21 = sphi 0, %s33
      %s22 = sphi 0, %s29
      %s23 = sphi 0, %s21
      %s24 = sphi 0, %s22
      %s25 = sphi 0, %s23
      %s26 = sphi 0, %s24
      %s38 = sphi 0, %s40
      %s41 = sphi 0, %s38
      %s42 = sphi 0, %s41
      %s58 = sphi 0, %s42
      %s74 = sphi 0, %s76
      %s77 = sphi 0, %s74
      %s78 = sphi 0, %s77
      %s94 = sphi 0, %s78
      %s110 = sphi 0, %s112
      %s113 = sphi 0, %s110
      %s114 = sphi 0, %s113
      %s130 = sphi 0, %s114
      %s134 = sphi 0, %s134
      %s136 = sphi 0, %s134
      %s137 = sphi 0, %s136
      %s151 = sphi 0, %s137
      %s155 = sphi 0, %s155
      %s157 = sphi 0, %s155
      %s158 = sphi 0, %s157
      %s172 = sphi 0, %s158
      %s180 = sphi 0, %s182
      %s183 = sphi 0, %s180
      %s184 = sphi 0, %s183
      %s200 = sphi 0, %s184
    $region4: #{tpu_custom_call.1} parent=1 // loop_header_branch
      %17 = sbr.rel (%p15) target = $region8
    $region5: #{tpu_custom_call.1} parent=1 // loop_body
      %s19 = ssub.s32 %s14, 1
      %s20 = ssub.s32 %s14, 2
      %s27 = sadd.s32 1, %s22
      %p28 = scmp.ge.s32.totalorder %s27, 2
      %s29 = scalar_select %p28, 0, %s27
      %s30 = sadd.s32 1, %s21
      %s31 = scalar_select %p28, %s30, %s21
      %p32 = scmp.ge.s32.totalorder %s31, 4
      %s33 = scalar_select %p32, 0, %s31
      %s34 = ssub.s32 %s21, %s33
      %s35 = ssub.s32 %s22, %s29
      %s36 = sor.u32 %s34, %s35
      %p37 = scmp.eq.s32.totalorder %s36, 0
      %s39 = sadd.s32 %s38, 1
      %s40 = scalar_select %p37, %s38, %s39
      %p43 = pneg %p37
      %p44 = scmp.eq.s32.totalorder %s14, 7
      %p45 = por %p43, %p44
      %p46 = scmp.ne.s32.totalorder %s38, %s41
      %p47 = scmp.eq.s32.totalorder %s14, 0
      %p48 = por %p46, %p47
      %p49 = scmp.ne.s32.totalorder %s38, %s41
      %p50 = scmp.eq.s32.totalorder %s19, 7
      %p51 = por %p49, %p50
      %p52 = scmp.ne.s32.totalorder %s41, %s42
      %p53 = scmp.eq.s32.totalorder %s19, 0
      %p54 = por %p52, %p53
      %p55 = scmp.ne.s32.totalorder %s41, %s42
      %p56 = scmp.eq.s32.totalorder %s20, 7
      %p57 = por %p55, %p56
      %p59 = scmp.ne.s32.totalorder %s42, %s58
      %p60 = scmp.eq.s32.totalorder %s20, 0
      %p61 = por %p59, %p60
      %s62 = smul.u32 %s22, 8
      %s63 = ssub.s32 %s62, 1
      %p64 = scmp.gt.s32.totalorder %s63, 0
      %s65 = scalar_select %p64, %s63, 0
      %s66 = smul.u32 %s29, 8
      %s67 = ssub.s32 %s66, 1
      %p68 = scmp.gt.s32.totalorder %s67, 0
      %s69 = scalar_select %p68, %s67, 0
      %s70 = ssub.s32 %s21, %s33
      %s71 = ssub.s32 %s65, %s69
      %s72 = sor.u32 %s70, %s71
      %p73 = scmp.eq.s32.totalorder %s72, 0
      %s75 = sadd.s32 %s74, 1
      %s76 = scalar_select %p73, %s74, %s75
      %p79 = pneg %p73
      %p80 = scmp.eq.s32.totalorder %s14, 7
      %p81 = por %p79, %p80
      %p82 = scmp.ne.s32.totalorder %s74, %s77
      %p83 = scmp.eq.s32.totalorder %s14, 0
      %p84 = por %p82, %p83
      %p85 = scmp.ne.s32.totalorder %s74, %s77
      %p86 = scmp.eq.s32.totalorder %s19, 7
      %p87 = por %p85, %p86
      %p88 = scmp.ne.s32.totalorder %s77, %s78
      %p89 = scmp.eq.s32.totalorder %s19, 0
      %p90 = por %p88, %p89
      %p91 = scmp.ne.s32.totalorder %s77, %s78
      %p92 = scmp.eq.s32.totalorder %s20, 7
      %p93 = por %p91, %p92
      %p95 = scmp.ne.s32.totalorder %s78, %s94
      %p96 = scmp.eq.s32.totalorder %s20, 0
      %p97 = por %p95, %p96
      %s98 = smul.u32 %s22, 8
      %s99 = sadd.s32 %s98, 8
      %p100 = scmp.lt.s32.totalorder %s99, 15
      %s101 = scalar_select %p100, %s99, 15
      %s102 = smul.u32 %s29, 8
      %s103 = sadd.s32 %s102, 8
      %p104 = scmp.lt.s32.totalorder %s103, 15
      %s105 = scalar_select %p104, %s103, 15
      %s106 = ssub.s32 %s21, %s33
      %s107 = ssub.s32 %s101, %s105
      %s108 = sor.u32 %s106, %s107
      %p109 = scmp.eq.s32.totalorder %s108, 0
      %s111 = sadd.s32 %s110, 1
      %s112 = scalar_select %p109, %s110, %s111
      %p115 = pneg %p109
      %p116 = scmp.eq.s32.totalorder %s14, 7
      %p117 = por %p115, %p116
      %p118 = scmp.ne.s32.totalorder %s110, %s113
      %p119 = scmp.eq.s32.totalorder %s14, 0
      %p120 = por %p118, %p119
      %p121 = scmp.ne.s32.totalorder %s110, %s113
      %p122 = scmp.eq.s32.totalorder %s19, 7
      %p123 = por %p121, %p122
      %p124 = scmp.ne.s32.totalorder %s113, %s114
      %p125 = scmp.eq.s32.totalorder %s19, 0
      %p126 = por %p124, %p125
      %p127 = scmp.ne.s32.totalorder %s113, %s114
      %p128 = scmp.eq.s32.totalorder %s20, 7
      %p129 = por %p127, %p128
      %p131 = scmp.ne.s32.totalorder %s114, %s130
      %p132 = scmp.eq.s32.totalorder %s20, 0
      %p133 = por %p131, %p132
      %s135 = sadd.s32 %s134, 1
      %p138 = scmp.eq.s32.totalorder %s14, 7
      %p139 = scmp.ne.s32.totalorder %s134, %s136
      %p140 = scmp.eq.s32.totalorder %s14, 0
      %p141 = por %p139, %p140
      %p142 = scmp.ne.s32.totalorder %s134, %s136
      %p143 = scmp.eq.s32.totalorder %s19, 7
      %p144 = por %p142, %p143
      %p145 = scmp.ne.s32.totalorder %s136, %s137
      %p146 = scmp.eq.s32.totalorder %s19, 0
      %p147 = por %p145, %p146
      %p148 = scmp.ne.s32.totalorder %s136, %s137
      %p149 = scmp.eq.s32.totalorder %s20, 7
      %p150 = por %p148, %p149
      %p152 = scmp.ne.s32.totalorder %s137, %s151
      %p153 = scmp.eq.s32.totalorder %s20, 0
      %p154 = por %p152, %p153
      %s156 = sadd.s32 %s155, 1
      %p159 = scmp.eq.s32.totalorder %s14, 7
      %p160 = scmp.ne.s32.totalorder %s155, %s157
      %p161 = scmp.eq.s32.totalorder %s14, 0
      %p162 = por %p160, %p161
      %p163 = scmp.ne.s32.totalorder %s155, %s157
      %p164 = scmp.eq.s32.totalorder %s19, 7
      %p165 = por %p163, %p164
      %p166 = scmp.ne.s32.totalorder %s157, %s158
      %p167 = scmp.eq.s32.totalorder %s19, 0
      %p168 = por %p166, %p167
      %p169 = scmp.ne.s32.totalorder %s157, %s158
      %p170 = scmp.eq.s32.totalorder %s20, 7
      %p171 = por %p169, %p170
      %p173 = scmp.ne.s32.totalorder %s158, %s172
      %p174 = scmp.eq.s32.totalorder %s20, 0
      %p175 = por %p173, %p174
      %s176 = ssub.s32 %s21, %s33
      %s177 = ssub.s32 %s22, %s29
      %s178 = sor.u32 %s176, %s177
      %p179 = scmp.eq.s32.totalorder %s178, 0
      %s181 = sadd.s32 %s180, 1
      %s182 = scalar_select %p179, %s180, %s181
      %p185 = pneg %p179
      %p186 = scmp.eq.s32.totalorder %s14, 7
      %p187 = por %p185, %p186
      %p188 = scmp.ne.s32.totalorder %s180, %s183
      %p189 = scmp.eq.s32.totalorder %s14, 0
      %p190 = por %p188, %p189
      %p191 = scmp.ne.s32.totalorder %s180, %s183
      %p192 = scmp.eq.s32.totalorder %s19, 7
      %p193 = por %p191, %p192
      %p194 = scmp.ne.s32.totalorder %s183, %s184
      %p195 = scmp.eq.s32.totalorder %s19, 0
      %p196 = por %p194, %p195
      %p197 = scmp.ne.s32.totalorder %s183, %s184
      %p198 = scmp.eq.s32.totalorder %s20, 7
      %p199 = por %p197, %p198
      %p201 = scmp.ne.s32.totalorder %s184, %s200
      %p202 = scmp.eq.s32.totalorder %s20, 0
      %p203 = por %p201, %p202
      %p204 = scmp.le.s32.totalorder 1, %s14
      %p205 = scmp.lt.s32.totalorder %s14, 9
      %p206 = pnand %p204, %p205
      %p207 = pneg %p206
      // Predicated region
      $region9: #{tpu_custom_call.1} parent=5 // pred_check
        _
      $region10: #{tpu_custom_call.1} parent=5 // pred_check_branch
        %209 = sbr.rel (%p206) target = $region12
      $region11: #{tpu_custom_call.1} parent=5 // pred_region
        %s210 = ssub.s32 %s14, 1
        // Predicated region
        $region13: #{tpu_custom_call.1} parent=11 // pred_check
          %p211 = pneg %p147
        $region14: #{tpu_custom_call.1} parent=11 // pred_check_branch
          %213 = sbr.rel (%p211) target = $region16
        $region15: #{tpu_custom_call.1} parent=11 // pred_region
          _
        $region16: #{tpu_custom_call.1} parent=11 // pred_fallthru
          _
        // Predicated region
        $region17: #{tpu_custom_call.1} parent=11 // pred_check
          %p214 = pneg %p168
        $region18: #{tpu_custom_call.1} parent=11 // pred_check_branch
          %216 = sbr.rel (%p214) target = $region20
        $region19: #{tpu_custom_call.1} parent=11 // pred_region
          _
        $region20: #{tpu_custom_call.1} parent=11 // pred_fallthru
          _
      $region12: #{tpu_custom_call.1} parent=5 // pred_fallthru
        _
      %p217 = scmp.lt.s32.totalorder %s14, 8
      // Predicated region
      $region21: #{tpu_custom_call.1} parent=5 // pred_check
        %p218 = pneg %p217
      $region22: #{tpu_custom_call.1} parent=5 // pred_check_branch
        %220 = sbr.rel (%p218) target = $region24
      $region23: #{tpu_custom_call.1} parent=5 // pred_region
        // Predicated region
        $region25: #{tpu_custom_call.1} parent=23 // pred_check
          %p221 = pneg %p48
        $region26: #{tpu_custom_call.1} parent=23 // pred_check_branch
          %223 = sbr.rel (%p221) target = $region28
        $region27: #{tpu_custom_call.1} parent=23 // pred_region
          %s224 = smul.u32 8, %s22
          %p225 = scmp.lt.s32.totalorder %s21, 3
          %s226 = scalar_select %p225, %s21, 3
          %p227 = scmp.lt.s32.totalorder %s224, 15
          %s228 = scalar_select %p227, %s224, 15
          %s229 = smul.addr %s228, 2
          %s230 = smul.addr %s226, 32
          %s231 = sadd.s32 %s229, %s230
          %s232 = smul.addr %s231, 8
          %s233 = scalar_lea.vmem %s0, %s232
          %s234 = smul.u32 8, %s22
        $region28: #{tpu_custom_call.1} parent=23 // pred_fallthru
          _
        // Predicated region
        $region29: #{tpu_custom_call.1} parent=23 // pred_check
          %p235 = pneg %p84
        $region30: #{tpu_custom_call.1} parent=23 // pred_check_branch
          %237 = sbr.rel (%p235) target = $region32
        $region31: #{tpu_custom_call.1} parent=23 // pred_region
          %s238 = smul.u32 %s22, 8
          %s239 = ssub.s32 %s238, 1
          %p240 = scmp.gt.s32.totalorder %s239, 0
          %s241 = scalar_select %p240, %s239, 0
          %p242 = scmp.lt.s32.totalorder %s21, 3
          %s243 = scalar_select %p242, %s21, 3
          %p244 = scmp.lt.s32.totalorder %s241, 15
          %s245 = scalar_select %p244, %s241, 15
          %s246 = smul.addr %s245, 2
          %s247 = smul.addr %s243, 32
          %s248 = sadd.s32 %s246, %s247
          %s249 = smul.addr %s248, 8
          %s250 = scalar_lea.vmem %s1, %s249
          %s251 = smul.u32 %s22, 8
          %s252 = ssub.s32 %s251, 1
          %p253 = scmp.gt.s32.totalorder %s252, 0
          %s254 = scalar_select %p253, %s252, 0
        $region32: #{tpu_custom_call.1} parent=23 // pred_fallthru
          _
        // Predicated region
        $region33: #{tpu_custom_call.1} parent=23 // pred_check
          %p255 = pneg %p120
        $region34: #{tpu_custom_call.1} parent=23 // pred_check_branch
          %257 = sbr.rel (%p255) target = $region36
        $region35: #{tpu_custom_call.1} parent=23 // pred_region
          %s258 = smul.u32 %s22, 8
          %s259 = sadd.s32 %s258, 8
          %p260 = scmp.lt.s32.totalorder %s259, 15
          %s261 = scalar_select %p260, %s259, 15
          %p262 = scmp.lt.s32.totalorder %s21, 3
          %s263 = scalar_select %p262, %s21, 3
          %p264 = scmp.lt.s32.totalorder %s261, 15
          %s265 = scalar_select %p264, %s261, 15
          %s266 = smul.addr %s265, 2
          %s267 = smul.addr %s263, 32
          %s268 = sadd.s32 %s266, %s267
          %s269 = smul.addr %s268, 8
          %s270 = scalar_lea.vmem %s2, %s269
          %s271 = smul.u32 %s22, 8
          %s272 = sadd.s32 %s271, 8
          %p273 = scmp.lt.s32.totalorder %s272, 15
          %s274 = scalar_select %p273, %s272, 15
        $region36: #{tpu_custom_call.1} parent=23 // pred_fallthru
          _
      $region24: #{tpu_custom_call.1} parent=5 // pred_fallthru
        _
      %p275 = scmp.le.s32.totalorder 1, %s14
      %p276 = scmp.lt.s32.totalorder %s14, 9
      %p277 = pnand %p275, %p276
      %p278 = pneg %p277
      // Predicated region
      $region37: #{tpu_custom_call.1} parent=5 // pred_check
        _
      $region38: #{tpu_custom_call.1} parent=5 // pred_check_branch
        %280 = sbr.rel (%p277) target = $region40
      $region39: #{tpu_custom_call.1} parent=5 // pred_region
        %s281 = ssub.s32 %s14, 1
        %s282 = smul.u32 8, %s24
        %p283 = scmp.lt.s32.totalorder %s23, 3
        %s284 = scalar_select %p283, %s23, 3
        %p285 = scmp.lt.s32.totalorder %s282, 15
        %s286 = scalar_select %p285, %s282, 15
        %s287 = smul.addr %s286, 2
        %s288 = smul.addr %s284, 32
        %s289 = sadd.s32 %s287, %s288
        %s290 = smul.addr %s289, 8
        %s291 = scalar_lea.vmem %s0, %s290
        %p292 = pneg %p54
        %p293 = pneg %p51
        %s294 = smul.u32 %s24, 8
        %s295 = ssub.s32 %s294, 1
        %p296 = scmp.gt.s32.totalorder %s295, 0
        %s297 = scalar_select %p296, %s295, 0
        %p298 = scmp.lt.s32.totalorder %s23, 3
        %s299 = scalar_select %p298, %s23, 3
        %p300 = scmp.lt.s32.totalorder %s297, 15
        %s301 = scalar_select %p300, %s297, 15
        %s302 = smul.addr %s301, 2
        %s303 = smul.addr %s299, 32
        %s304 = sadd.s32 %s302, %s303
        %s305 = smul.addr %s304, 8
        %s306 = scalar_lea.vmem %s1, %s305
        %p307 = pneg %p90
        %p308 = pneg %p87
        %s309 = smul.u32 %s24, 8
        %s310 = sadd.s32 %s309, 8
        %p311 = scmp.lt.s32.totalorder %s310, 15
        %s312 = scalar_select %p311, %s310, 15
        %p313 = scmp.lt.s32.totalorder %s23, 3
        %s314 = scalar_select %p313, %s23, 3
        %p315 = scmp.lt.s32.totalorder %s312, 15
        %s316 = scalar_select %p315, %s312, 15
        %s317 = smul.addr %s316, 2
        %s318 = smul.addr %s314, 32
        %s319 = sadd.s32 %s317, %s318
        %s320 = smul.addr %s319, 8
        %s321 = scalar_lea.vmem %s2, %s320
        %p322 = pneg %p126
        %p323 = pneg %p123
        %p324 = pneg %p147
        %p325 = pneg %p144
        %p326 = pneg %p168
        %p327 = pneg %p165
        %p328 = pneg %p196
        %p329 = pneg %p193
        %s330 = sand.u32 %s183, 1
        %s331 = scalar_lea.sflag [#allocation3], %s330
        %s332 = sand.u32 %s183, 1
        %s333 = smul.addr %s332, 128
        %s334 = scalar_lea.vmem [#allocation2], %s333
        %s335 = smul.u32 8, %s24
        %p336 = scmp.lt.s32.totalorder %s23, 3
        %s337 = scalar_select %p336, %s23, 3
        %p338 = scmp.lt.s32.totalorder %s335, 15
        %s339 = scalar_select %p338, %s335, 15
        %s340 = smul.addr %s339, 2
        %s341 = smul.addr %s337, 32
        %s342 = sadd.s32 %s340, %s341
        %s343 = smul.addr %s342, 8
        %s344 = scalar_lea.vmem %s0, %s343
        %s345 = smul.u32 8, %s24
        %s346 = smul.u32 %s24, 8
        %s347 = ssub.s32 %s346, 1
        %p348 = scmp.gt.s32.totalorder %s347, 0
        %s349 = scalar_select %p348, %s347, 0
        %p350 = scmp.lt.s32.totalorder %s23, 3
        %s351 = scalar_select %p350, %s23, 3
        %p352 = scmp.lt.s32.totalorder %s349, 15
        %s353 = scalar_select %p352, %s349, 15
        %s354 = smul.addr %s353, 2
        %s355 = smul.addr %s351, 32
        %s356 = sadd.s32 %s354, %s355
        %s357 = smul.addr %s356, 8
        %s358 = scalar_lea.vmem %s1, %s357
        %s359 = smul.u32 %s24, 8
        %s360 = ssub.s32 %s359, 1
        %p361 = scmp.gt.s32.totalorder %s360, 0
        %s362 = scalar_select %p361, %s360, 0
        %s363 = smul.u32 %s24, 8
        %s364 = sadd.s32 %s363, 8
        %p365 = scmp.lt.s32.totalorder %s364, 15
        %s366 = scalar_select %p365, %s364, 15
        %p367 = scmp.lt.s32.totalorder %s23, 3
        %s368 = scalar_select %p367, %s23, 3
        %p369 = scmp.lt.s32.totalorder %s366, 15
        %s370 = scalar_select %p369, %s366, 15
        %s371 = smul.addr %s370, 2
        %s372 = smul.addr %s368, 32
        %s373 = sadd.s32 %s371, %s372
        %s374 = smul.addr %s373, 8
        %s375 = scalar_lea.vmem %s2, %s374
        %s376 = smul.u32 %s24, 8
        %s377 = sadd.s32 %s376, 8
        %p378 = scmp.lt.s32.totalorder %s377, 15
        %s379 = scalar_select %p378, %s377, 15
        %s380 = smul.u32 8, %s24
        %p382 = scmp.gt.s32.totalorder %s24, 0
        %s383 = scalar_select %p382, 1, 0
        %s384 = scvt.s32.f32 %s383
        %p385 = scmp.lt.s32.totalorder %s24, 1
        %s386 = scalar_select %p385, 1, 0
        %s387 = scvt.s32.f32 %s386
        %v388 = vld [vmem:[%s358] sm:$0xff]
        %v389 = vld [vmem:[%s358 + $0x8] sm:$0xff]
        %v390 = vstv %s384
        %v391 = vmul.f32 %v388, %v390
        %v392 = vmul.f32 %v389, %v390
        %v393 = vld [vmem:[%s375] sm:$0xff]
        %v394 = vld [vmem:[%s375 + $0x8] sm:$0xff]
        %v395 = vstv %s387
        %v396 = vmul.f32 %v393, %v395
        %v397 = vmul.f32 %v394, %v395
        %v398 = vld [vmem:[%s344] sm:$0xff]
        %v399 = vld [vmem:[%s344 + $0x8] sm:$0xff]
        %v400 = vld [vmem:[%s344 + $0x10] sm:$0xff]
        %v401 = vld [vmem:[%s344 + $0x18] sm:$0xff]
        %v402 = vld [vmem:[%s344 + $0x20] sm:$0xff]
        %v403 = vld [vmem:[%s344 + $0x28] sm:$0xff]
        %v404 = vld [vmem:[%s344 + $0x30] sm:$0xff]
        %v405 = vld [vmem:[%s344 + $0x38] sm:$0xff]
        %v406 = vld [vmem:[%s344 + $0x40] sm:$0xff]
        %v407 = vld [vmem:[%s344 + $0x48] sm:$0xff]
        %v408 = vld [vmem:[%s344 + $0x50] sm:$0xff]
        %v409 = vld [vmem:[%s344 + $0x58] sm:$0xff]
        %v410 = vld [vmem:[%s344 + $0x60] sm:$0xff]
        %v411 = vld [vmem:[%s344 + $0x68] sm:$0xff]
        %v412 = vld [vmem:[%s344 + $0x70] sm:$0xff]
        %v413 = vld [vmem:[%s344 + $0x78] sm:$0xff]
        %v414 = vpack.c.bf16 %v391, %v391
        %v415 = vpack.c.bf16 %v392, %v392
        %v416 = vpack.c.bf16 %v398, %v398
        %v417 = vpack.c.bf16 %v399, %v399
        %v418 = vpack.c.bf16 %v400, %v400
        %v419 = vpack.c.bf16 %v401, %v401
        %v420 = vpack.c.bf16 %v402, %v402
        %v421 = vpack.c.bf16 %v403, %v403
        %v422 = vpack.c.bf16 %v404, %v404
        %v423 = vpack.c.bf16 %v405, %v405
        %v424 = vpack.c.bf16 %v406, %v406
        %v425 = vpack.c.bf16 %v407, %v407
        %v426 = vpack.c.bf16 %v408, %v408
        %v427 = vpack.c.bf16 %v409, %v409
        %v428 = vpack.c.bf16 %v410, %v410
        %v429 = vpack.c.bf16 %v411, %v411
        %v430 = vpack.c.bf16 %v412, %v412
        %v431 = vpack.c.bf16 %v413, %v413
        %v432 = vpack.c.bf16 %v396, %v396
        %v433 = vpack.c.bf16 %v397, %v397
        %v454 = vunpack.c.l.b16 %v414
        %v455 = vunpack.c.l.b16 %v415
        %v456 = vunpack.c.l.b16 %v416
        %v457 = vunpack.c.l.b16 %v417
        %v458 = vunpack.c.l.b16 %v418
        %v459 = vunpack.c.l.b16 %v419
        %v460 = vunpack.c.l.b16 %v420
        %v461 = vunpack.c.l.b16 %v421
        %v462 = vunpack.c.l.b16 %v422
        %v463 = vunpack.c.l.b16 %v423
        %v464 = vunpack.c.l.b16 %v424
        %v465 = vunpack.c.l.b16 %v425
        %v466 = vunpack.c.l.b16 %v426
        %v467 = vunpack.c.l.b16 %v427
        %v468 = vunpack.c.l.b16 %v428
        %v469 = vunpack.c.l.b16 %v429
        %v470 = vunpack.c.l.b16 %v430
        %v471 = vunpack.c.l.b16 %v431
        %v472 = vunpack.c.l.b16 %v432
        %v473 = vunpack.c.l.b16 %v433
        %v474 = vpack.c.b16 %v455, %v454
        %v475 = vpack.c.b16 %v457, %v456
        %v476 = vpack.c.b16 %v459, %v458
        %v477 = vpack.c.b16 %v461, %v460
        %v478 = vpack.c.b16 %v463, %v462
        %v479 = vpack.c.b16 %v465, %v464
        %v480 = vpack.c.b16 %v467, %v466
        %v481 = vpack.c.b16 %v469, %v468
        %v482 = vpack.c.b16 %v471, %v470
        %v483 = vpack.c.b16 %v473, %v472
        %v485 = vshrl.u32 %v474, 16
        %v487 = vrot.slane %v485, 7
        %v488 = vshll.u32 %v474, 16
        %v490 = vor.u32 %v487, %v488
        %v492 = vshrl.u32 %v475, 16
        %v494 = vrot.slane %v492, 7
        %v495 = vshll.u32 %v475, 16
        %v497 = vor.u32 %v494, %v495
        %v499 = vshrl.u32 %v476, 16
        %v501 = vrot.slane %v499, 7
        %v502 = vshll.u32 %v476, 16
        %v504 = vor.u32 %v501, %v502
        %v506 = vshrl.u32 %v477, 16
        %v508 = vrot.slane %v506, 7
        %v509 = vshll.u32 %v477, 16
        %v511 = vor.u32 %v508, %v509
        %v513 = vshrl.u32 %v478, 16
        %v515 = vrot.slane %v513, 7
        %v516 = vshll.u32 %v478, 16
        %v518 = vor.u32 %v515, %v516
        %v520 = vshrl.u32 %v479, 16
        %v522 = vrot.slane %v520, 7
        %v523 = vshll.u32 %v479, 16
        %v525 = vor.u32 %v522, %v523
        %v527 = vshrl.u32 %v480, 16
        %v529 = vrot.slane %v527, 7
        %v530 = vshll.u32 %v480, 16
        %v532 = vor.u32 %v529, %v530
        %v534 = vshrl.u32 %v481, 16
        %v536 = vrot.slane %v534, 7
        %v537 = vshll.u32 %v481, 16
        %v539 = vor.u32 %v536, %v537
        %v541 = vshrl.u32 %v482, 16
        %v543 = vrot.slane %v541, 7
        %v544 = vshll.u32 %v482, 16
        %v546 = vor.u32 %v543, %v544
        %v548 = vshrl.u32 %v483, 16
        %v550 = vrot.slane %v548, 7
        %v551 = vshll.u32 %v483, 16
        %v553 = vor.u32 %v550, %v551
        %vm574 = vcmask 1040384
        %vm575 = vsmask.f32 256
        %vm576 = vmand %vm574, %vm575
        %v577 = vsel %vm576, 0, %v490
        %v578 = vsel %vm576, 0, %v497
        %v579 = vsel %vm576, 0, %v504
        %v580 = vsel %vm576, 0, %v511
        %v581 = vsel %vm576, 0, %v518
        %v582 = vsel %vm576, 0, %v525
        %v583 = vsel %vm576, 0, %v532
        %v584 = vsel %vm576, 0, %v539
        %v585 = vsel %vm576, 0, %v546
        %v586 = vsel %vm576, 0, %v553
        %v587 = vsel %vm576, %v487, 0
        %v588 = vsel %vm576, %v494, 0
        %v589 = vsel %vm576, %v501, 0
        %v590 = vsel %vm576, %v508, 0
        %v591 = vsel %vm576, %v515, 0
        %v592 = vsel %vm576, %v522, 0
        %v593 = vsel %vm576, %v529, 0
        %v594 = vsel %vm576, %v536, 0
        %v595 = vsel %vm576, %v543, 0
        %v596 = vsel %vm576, %v550, 0
        %613 = vrot.lane.b32.xlu0 %v578, 3
        %v614 = vpop.permute.xlu0 %613
        %615 = vrot.lane.b32.xlu0 %v588, 3
        %v616 = vpop.permute.xlu0 %615
        %617 = vrot.lane.b32.xlu0 %v579, 3
        %v618 = vpop.permute.xlu0 %617
        %619 = vrot.lane.b32.xlu0 %v589, 3
        %v620 = vpop.permute.xlu0 %619
        %621 = vrot.lane.b32.xlu0 %v580, 3
        %v622 = vpop.permute.xlu0 %621
        %623 = vrot.lane.b32.xlu0 %v590, 3
        %v624 = vpop.permute.xlu0 %623
        %625 = vrot.lane.b32.xlu0 %v581, 3
        %v626 = vpop.permute.xlu0 %625
        %627 = vrot.lane.b32.xlu0 %v591, 3
        %v628 = vpop.permute.xlu0 %627
        %629 = vrot.lane.b32.xlu0 %v582, 3
        %v630 = vpop.permute.xlu0 %629
        %631 = vrot.lane.b32.xlu0 %v592, 3
        %v632 = vpop.permute.xlu0 %631
        %633 = vrot.lane.b32.xlu0 %v583, 3
        %v634 = vpop.permute.xlu0 %633
        %635 = vrot.lane.b32.xlu0 %v593, 3
        %v636 = vpop.permute.xlu0 %635
        %637 = vrot.lane.b32.xlu0 %v584, 3
        %v638 = vpop.permute.xlu0 %637
        %639 = vrot.lane.b32.xlu0 %v594, 3
        %v640 = vpop.permute.xlu0 %639
        %641 = vrot.lane.b32.xlu0 %v585, 3
        %v642 = vpop.permute.xlu0 %641
        %643 = vrot.lane.b32.xlu0 %v595, 3
        %v644 = vpop.permute.xlu0 %643
        %647 = vrot.lane.b32.xlu0 %v579, 6
        %v648 = vpop.permute.xlu0 %647
        %649 = vrot.lane.b32.xlu0 %v589, 6
        %v650 = vpop.permute.xlu0 %649
        %651 = vrot.lane.b32.xlu0 %v580, 6
        %v652 = vpop.permute.xlu0 %651
        %653 = vrot.lane.b32.xlu0 %v590, 6
        %v654 = vpop.permute.xlu0 %653
        %655 = vrot.lane.b32.xlu0 %v581, 6
        %v656 = vpop.permute.xlu0 %655
        %657 = vrot.lane.b32.xlu0 %v591, 6
        %v658 = vpop.permute.xlu0 %657
        %659 = vrot.lane.b32.xlu0 %v582, 6
        %v660 = vpop.permute.xlu0 %659
        %661 = vrot.lane.b32.xlu0 %v592, 6
        %v662 = vpop.permute.xlu0 %661
        %663 = vrot.lane.b32.xlu0 %v583, 6
        %v664 = vpop.permute.xlu0 %663
        %665 = vrot.lane.b32.xlu0 %v593, 6
        %v666 = vpop.permute.xlu0 %665
        %667 = vrot.lane.b32.xlu0 %v584, 6
        %v668 = vpop.permute.xlu0 %667
        %669 = vrot.lane.b32.xlu0 %v594, 6
        %v670 = vpop.permute.xlu0 %669
        %671 = vrot.lane.b32.xlu0 %v585, 6
        %v672 = vpop.permute.xlu0 %671
        %673 = vrot.lane.b32.xlu0 %v595, 6
        %v674 = vpop.permute.xlu0 %673
        %675 = vrot.lane.b32.xlu0 %v586, 6
        %v676 = vpop.permute.xlu0 %675
        %677 = vrot.lane.b32.xlu0 %v596, 6
        %v678 = vpop.permute.xlu0 %677
        %vm679 = vcmask 23552
        %v682 = vsel %vm679, %v577, %v614
        %v685 = vsel %vm679, %v587, %v616
        %v688 = vsel %vm679, %v578, %v618
        %v691 = vsel %vm679, %v588, %v620
        %v694 = vsel %vm679, %v579, %v622
        %v697 = vsel %vm679, %v589, %v624
        %v700 = vsel %vm679, %v580, %v626
        %v703 = vsel %vm679, %v590, %v628
        %v706 = vsel %vm679, %v581, %v630
        %v709 = vsel %vm679, %v591, %v632
        %v712 = vsel %vm679, %v582, %v634
        %v715 = vsel %vm679, %v592, %v636
        %v718 = vsel %vm679, %v583, %v638
        %v721 = vsel %vm679, %v593, %v640
        %v724 = vsel %vm679, %v584, %v642
        %v727 = vsel %vm679, %v594, %v644
        %vm728 = vcmask 48128
        %v730 = vsel %vm728, %v682, %v648
        %v732 = vsel %vm728, %v685, %v650
        %v734 = vsel %vm728, %v688, %v652
        %v736 = vsel %vm728, %v691, %v654
        %v738 = vsel %vm728, %v694, %v656
        %v740 = vsel %vm728, %v697, %v658
        %v742 = vsel %vm728, %v700, %v660
        %v744 = vsel %vm728, %v703, %v662
        %v746 = vsel %vm728, %v706, %v664
        %v748 = vsel %vm728, %v709, %v666
        %v750 = vsel %vm728, %v712, %v668
        %v752 = vsel %vm728, %v715, %v670
        %v754 = vsel %vm728, %v718, %v672
        %v756 = vsel %vm728, %v721, %v674
        %v758 = vsel %vm728, %v724, %v676
        %v760 = vsel %vm728, %v727, %v678
        %v761 = vld [vmem:[%s3] sm:$0xf]
        %v762 = vld [vmem:[%s3 + $0x4] sm:$0x1]
        %v765 = vunpack.c.l.b16 %v761
        %v766 = vunpack.c.l.b16 %v762
        %v767 = vpack.c.b16 %v766, %v765
        %vm768 = vcmask 72704
        %v769 = vsel %vm768, %v730, 0
        %v771 = vsel %vm768, %v732, 0
        %v773 = vsel %vm768, %v734, 0
        %v775 = vsel %vm768, %v736, 0
        %v777 = vsel %vm768, %v738, 0
        %v779 = vsel %vm768, %v740, 0
        %v781 = vsel %vm768, %v742, 0
        %v783 = vsel %vm768, %v744, 0
        %v785 = vsel %vm768, %v746, 0
        %v787 = vsel %vm768, %v748, 0
        %v789 = vsel %vm768, %v750, 0
        %v791 = vsel %vm768, %v752, 0
        %v793 = vsel %vm768, %v754, 0
        %v795 = vsel %vm768, %v756, 0
        %v797 = vsel %vm768, %v758, 0
        %v799 = vsel %vm768, %v760, 0
        %vm801 = vcmask 1043456
        %vm802 = vcmask 1044480
        %v803 = vsel %vm801, 4294967295, 65535
        %v804 = vsel %vm802, %v803, 0
        %v806 = vand.u32 %v767, %v804
        %808 = vmatpush.bf16.msra.mxu0 0
        %809 = vmatpush.bf16.msra.mxu0 0
        %810 = vmatpush.bf16.msra.mxu0 0
        %811 = vmatpush.bf16.msra.mxu0 0
        %812 = vmatpush.bf16.msra.mxu0 0
        %813 = vmatpush.bf16.msra.mxu0 0
        %814 = vmatpush.bf16.msra.mxu0 0
        %815 = vmatpush.bf16.msra.mxu0 %v806
        %816 = vmatmul.bf16.gmra.mxu0 %v769
        %v817 = vpop.f32.mrf.mxu0
        %v818 = vadd.f32 0.0, %v817
        %v819 = vpop.f32.mrf.mxu0
        %v820 = vadd.f32 0.0, %v819
        %821 = vmatmul.bf16.gmra.mxu0 %v771
        %v822 = vpop.f32.mrf.mxu0
        %v823 = vpop.f32.mrf.mxu0
        %824 = vmatmul.bf16.gmra.mxu0 %v773
        %v825 = vpop.f32.mrf.mxu0
        %v826 = vadd.f32 0.0, %v825
        %v827 = vpop.f32.mrf.mxu0
        %v828 = vadd.f32 0.0, %v827
        %829 = vmatmul.bf16.gmra.mxu0 %v775
        %v830 = vpop.f32.mrf.mxu0
        %v831 = vpop.f32.mrf.mxu0
        %832 = vmatmul.bf16.gmra.mxu0 %v777
        %v833 = vpop.f32.mrf.mxu0
        %v834 = vadd.f32 0.0, %v833
        %v835 = vpop.f32.mrf.mxu0
        %v836 = vadd.f32 0.0, %v835
        %837 = vmatmul.bf16.gmra.mxu0 %v779
        %v838 = vpop.f32.mrf.mxu0
        %v839 = vpop.f32.mrf.mxu0
        %840 = vmatmul.bf16.gmra.mxu0 %v781
        %v841 = vpop.f32.mrf.mxu0
        %v842 = vadd.f32 0.0, %v841
        %v843 = vpop.f32.mrf.mxu0
        %v844 = vadd.f32 0.0, %v843
        %845 = vmatmul.bf16.gmra.mxu0 %v783
        %v846 = vpop.f32.mrf.mxu0
        %v847 = vpop.f32.mrf.mxu0
        %848 = vmatmul.bf16.gmra.mxu0 %v785
        %v849 = vpop.f32.mrf.mxu0
        %v850 = vadd.f32 0.0, %v849
        %v851 = vpop.f32.mrf.mxu0
        %v852 = vadd.f32 0.0, %v851
        %853 = vmatmul.bf16.gmra.mxu0 %v787
        %v854 = vpop.f32.mrf.mxu0
        %v855 = vpop.f32.mrf.mxu0
        %856 = vmatmul.bf16.gmra.mxu0 %v789
        %v857 = vpop.f32.mrf.mxu0
        %v858 = vadd.f32 0.0, %v857
        %v859 = vpop.f32.mrf.mxu0
        %v860 = vadd.f32 0.0, %v859
        %861 = vmatmul.bf16.gmra.mxu0 %v791
        %v862 = vpop.f32.mrf.mxu0
        %v863 = vpop.f32.mrf.mxu0
        %864 = vmatmul.bf16.gmra.mxu0 %v793
        %v865 = vpop.f32.mrf.mxu0
        %v866 = vadd.f32 0.0, %v865
        %v867 = vpop.f32.mrf.mxu0
        %v868 = vadd.f32 0.0, %v867
        %869 = vmatmul.bf16.gmra.mxu0 %v795
        %v870 = vpop.f32.mrf.mxu0
        %v871 = vpop.f32.mrf.mxu0
        %872 = vmatmul.bf16.gmra.mxu0 %v797
        %v873 = vpop.f32.mrf.mxu0
        %v874 = vadd.f32 0.0, %v873
        %v875 = vpop.f32.mrf.mxu0
        %v876 = vadd.f32 0.0, %v875
        %877 = vmatmul.bf16.gmra.mxu0 %v799
        %v878 = vpop.f32.mrf.mxu0
        %v879 = vpop.f32.mrf.mxu0
        %880 = vdwg.mxu0
        %v881 = vadd.f32 %v818, 0.0
        %v882 = vadd.f32 %v820, 0.0
        %v883 = vadd.f32 %v826, 0.0
        %v884 = vadd.f32 %v828, 0.0
        %v885 = vadd.f32 %v834, 0.0
        %v886 = vadd.f32 %v836, 0.0
        %v887 = vadd.f32 %v842, 0.0
        %v888 = vadd.f32 %v844, 0.0
        %v889 = vadd.f32 %v850, 0.0
        %v890 = vadd.f32 %v852, 0.0
        %v891 = vadd.f32 %v858, 0.0
        %v892 = vadd.f32 %v860, 0.0
        %v893 = vadd.f32 %v866, 0.0
        %v894 = vadd.f32 %v868, 0.0
        %v895 = vadd.f32 %v874, 0.0
        %v896 = vadd.f32 %v876, 0.0
        %s897 = scalar_lea.vmem %s3, 8
        %v898 = vld [vmem:[%s897] sm:$0xf]
        %v899 = vld [vmem:[%s897 + $0x4] sm:$0x1]
        %v902 = vunpack.c.l.b16 %v898
        %v903 = vunpack.c.l.b16 %v899
        %v904 = vpack.c.b16 %v903, %v902
        %v906 = vand.u32 %v904, %v804
        %908 = vmatpush.bf16.msra.mxu0 0
        %909 = vmatpush.bf16.msra.mxu0 0
        %910 = vmatpush.bf16.msra.mxu0 0
        %911 = vmatpush.bf16.msra.mxu0 0
        %912 = vmatpush.bf16.msra.mxu0 0
        %913 = vmatpush.bf16.msra.mxu0 0
        %914 = vmatpush.bf16.msra.mxu0 0
        %915 = vmatpush.bf16.msra.mxu0 %v906
        %916 = vmatmul.bf16.gmra.mxu0 %v769
        %v917 = vpop.f32.mrf.mxu0
        %v918 = vadd.f32 0.0, %v917
        %v919 = vpop.f32.mrf.mxu0
        %v920 = vadd.f32 0.0, %v919
        %921 = vmatmul.bf16.gmra.mxu0 %v771
        %v922 = vpop.f32.mrf.mxu0
        %v923 = vadd.f32 0.0, %v922
        %v924 = vpop.f32.mrf.mxu0
        %925 = vmatmul.bf16.gmra.mxu0 %v773
        %v926 = vpop.f32.mrf.mxu0
        %v927 = vadd.f32 0.0, %v926
        %v928 = vpop.f32.mrf.mxu0
        %v929 = vadd.f32 0.0, %v928
        %930 = vmatmul.bf16.gmra.mxu0 %v775
        %v931 = vpop.f32.mrf.mxu0
        %v932 = vadd.f32 0.0, %v931
        %v933 = vpop.f32.mrf.mxu0
        %934 = vmatmul.bf16.gmra.mxu0 %v777
        %v935 = vpop.f32.mrf.mxu0
        %v936 = vadd.f32 0.0, %v935
        %v937 = vpop.f32.mrf.mxu0
        %v938 = vadd.f32 0.0, %v937
        %939 = vmatmul.bf16.gmra.mxu0 %v779
        %v940 = vpop.f32.mrf.mxu0
        %v941 = vadd.f32 0.0, %v940
        %v942 = vpop.f32.mrf.mxu0
        %943 = vmatmul.bf16.gmra.mxu0 %v781
        %v944 = vpop.f32.mrf.mxu0
        %v945 = vadd.f32 0.0, %v944
        %v946 = vpop.f32.mrf.mxu0
        %v947 = vadd.f32 0.0, %v946
        %948 = vmatmul.bf16.gmra.mxu0 %v783
        %v949 = vpop.f32.mrf.mxu0
        %v950 = vadd.f32 0.0, %v949
        %v951 = vpop.f32.mrf.mxu0
        %952 = vmatmul.bf16.gmra.mxu0 %v785
        %v953 = vpop.f32.mrf.mxu0
        %v954 = vadd.f32 0.0, %v953
        %v955 = vpop.f32.mrf.mxu0
        %v956 = vadd.f32 0.0, %v955
        %957 = vmatmul.bf16.gmra.mxu0 %v787
        %v958 = vpop.f32.mrf.mxu0
        %v959 = vadd.f32 0.0, %v958
        %v960 = vpop.f32.mrf.mxu0
        %961 = vmatmul.bf16.gmra.mxu0 %v789
        %v962 = vpop.f32.mrf.mxu0
        %v963 = vadd.f32 0.0, %v962
        %v964 = vpop.f32.mrf.mxu0
        %v965 = vadd.f32 0.0, %v964
        %966 = vmatmul.bf16.gmra.mxu0 %v791
        %v967 = vpop.f32.mrf.mxu0
        %v968 = vadd.f32 0.0, %v967
        %v969 = vpop.f32.mrf.mxu0
        %970 = vmatmul.bf16.gmra.mxu0 %v793
        %v971 = vpop.f32.mrf.mxu0
        %v972 = vadd.f32 0.0, %v971
        %v973 = vpop.f32.mrf.mxu0
        %v974 = vadd.f32 0.0, %v973
        %975 = vmatmul.bf16.gmra.mxu0 %v795
        %v976 = vpop.f32.mrf.mxu0
        %v977 = vadd.f32 0.0, %v976
        %v978 = vpop.f32.mrf.mxu0
        %979 = vmatmul.bf16.gmra.mxu0 %v797
        %v980 = vpop.f32.mrf.mxu0
        %v981 = vadd.f32 0.0, %v980
        %v982 = vpop.f32.mrf.mxu0
        %v983 = vadd.f32 0.0, %v982
        %984 = vmatmul.bf16.gmra.mxu0 %v799
        %v985 = vpop.f32.mrf.mxu0
        %v986 = vadd.f32 0.0, %v985
        %v987 = vpop.f32.mrf.mxu0
        %988 = vdwg.mxu0
        %vm1013 = vcmask 1046528
        %v1014 = vrot.slane %v918, 1
        %v1015 = vrot.slane %v920, 1
        %v1016 = vsel %vm1013, %v1014, %v1015
        %v1017 = vrot.slane %v923, 1
        %v1018 = vsel %vm1013, %v1015, %v1017
        %v1019 = vrot.slane %v927, 1
        %v1020 = vrot.slane %v929, 1
        %v1021 = vsel %vm1013, %v1019, %v1020
        %v1022 = vrot.slane %v932, 1
        %v1023 = vsel %vm1013, %v1020, %v1022
        %v1024 = vrot.slane %v936, 1
        %v1025 = vrot.slane %v938, 1
        %v1026 = vsel %vm1013, %v1024, %v1025
        %v1027 = vrot.slane %v941, 1
        %v1028 = vsel %vm1013, %v1025, %v1027
        %v1029 = vrot.slane %v945, 1
        %v1030 = vrot.slane %v947, 1
        %v1031 = vsel %vm1013, %v1029, %v1030
        %v1032 = vrot.slane %v950, 1
        %v1033 = vsel %vm1013, %v1030, %v1032
        %v1034 = vrot.slane %v954, 1
        %v1035 = vrot.slane %v956, 1
        %v1036 = vsel %vm1013, %v1034, %v1035
        %v1037 = vrot.slane %v959, 1
        %v1038 = vsel %vm1013, %v1035, %v1037
        %v1039 = vrot.slane %v963, 1
        %v1040 = vrot.slane %v965, 1
        %v1041 = vsel %vm1013, %v1039, %v1040
        %v1042 = vrot.slane %v968, 1
        %v1043 = vsel %vm1013, %v1040, %v1042
        %v1044 = vrot.slane %v972, 1
        %v1045 = vrot.slane %v974, 1
        %v1046 = vsel %vm1013, %v1044, %v1045
        %v1047 = vrot.slane %v977, 1
        %v1048 = vsel %vm1013, %v1045, %v1047
        %v1049 = vrot.slane %v981, 1
        %v1050 = vrot.slane %v983, 1
        %v1051 = vsel %vm1013, %v1049, %v1050
        %v1052 = vrot.slane %v986, 1
        %v1053 = vsel %vm1013, %v1050, %v1052
        %v1070 = vadd.f32 %v881, %v1016
        %v1071 = vadd.f32 %v882, %v1018
        %v1072 = vadd.f32 %v883, %v1021
        %v1073 = vadd.f32 %v884, %v1023
        %v1074 = vadd.f32 %v885, %v1026
        %v1075 = vadd.f32 %v886, %v1028
        %v1076 = vadd.f32 %v887, %v1031
        %v1077 = vadd.f32 %v888, %v1033
        %v1078 = vadd.f32 %v889, %v1036
        %v1079 = vadd.f32 %v890, %v1038
        %v1080 = vadd.f32 %v891, %v1041
        %v1081 = vadd.f32 %v892, %v1043
        %v1082 = vadd.f32 %v893, %v1046
        %v1083 = vadd.f32 %v894, %v1048
        %v1084 = vadd.f32 %v895, %v1051
        %v1085 = vadd.f32 %v896, %v1053
        %s1086 = scalar_lea.vmem %s3, 16
        %v1087 = vld [vmem:[%s1086] sm:$0xf]
        %v1088 = vld [vmem:[%s1086 + $0x4] sm:$0x1]
        %v1091 = vunpack.c.l.b16 %v1087
        %v1092 = vunpack.c.l.b16 %v1088
        %v1093 = vpack.c.b16 %v1092, %v1091
        %v1095 = vand.u32 %v1093, %v804
        %1097 = vmatpush.bf16.msra.mxu0 0
        %1098 = vmatpush.bf16.msra.mxu0 0
        %1099 = vmatpush.bf16.msra.mxu0 0
        %1100 = vmatpush.bf16.msra.mxu0 0
        %1101 = vmatpush.bf16.msra.mxu0 0
        %1102 = vmatpush.bf16.msra.mxu0 0
        %1103 = vmatpush.bf16.msra.mxu0 0
        %1104 = vmatpush.bf16.msra.mxu0 %v1095
        %1105 = vmatmul.bf16.gmra.mxu0 %v769
        %v1106 = vpop.f32.mrf.mxu0
        %v1107 = vadd.f32 0.0, %v1106
        %v1108 = vpop.f32.mrf.mxu0
        %v1109 = vadd.f32 0.0, %v1108
        %1110 = vmatmul.bf16.gmra.mxu0 %v771
        %v1111 = vpop.f32.mrf.mxu0
        %v1112 = vadd.f32 0.0, %v1111
        %v1113 = vpop.f32.mrf.mxu0
        %1114 = vmatmul.bf16.gmra.mxu0 %v773
        %v1115 = vpop.f32.mrf.mxu0
        %v1116 = vadd.f32 0.0, %v1115
        %v1117 = vpop.f32.mrf.mxu0
        %v1118 = vadd.f32 0.0, %v1117
        %1119 = vmatmul.bf16.gmra.mxu0 %v775
        %v1120 = vpop.f32.mrf.mxu0
        %v1121 = vadd.f32 0.0, %v1120
        %v1122 = vpop.f32.mrf.mxu0
        %1123 = vmatmul.bf16.gmra.mxu0 %v777
        %v1124 = vpop.f32.mrf.mxu0
        %v1125 = vadd.f32 0.0, %v1124
        %v1126 = vpop.f32.mrf.mxu0
        %v1127 = vadd.f32 0.0, %v1126
        %1128 = vmatmul.bf16.gmra.mxu0 %v779
        %v1129 = vpop.f32.mrf.mxu0
        %v1130 = vadd.f32 0.0, %v1129
        %v1131 = vpop.f32.mrf.mxu0
        %1132 = vmatmul.bf16.gmra.mxu0 %v781
        %v1133 = vpop.f32.mrf.mxu0
        %v1134 = vadd.f32 0.0, %v1133
        %v1135 = vpop.f32.mrf.mxu0
        %v1136 = vadd.f32 0.0, %v1135
        %1137 = vmatmul.bf16.gmra.mxu0 %v783
        %v1138 = vpop.f32.mrf.mxu0
        %v1139 = vadd.f32 0.0, %v1138
        %v1140 = vpop.f32.mrf.mxu0
        %1141 = vmatmul.bf16.gmra.mxu0 %v785
        %v1142 = vpop.f32.mrf.mxu0
        %v1143 = vadd.f32 0.0, %v1142
        %v1144 = vpop.f32.mrf.mxu0
        %v1145 = vadd.f32 0.0, %v1144
        %1146 = vmatmul.bf16.gmra.mxu0 %v787
        %v1147 = vpop.f32.mrf.mxu0
        %v1148 = vadd.f32 0.0, %v1147
        %v1149 = vpop.f32.mrf.mxu0
        %1150 = vmatmul.bf16.gmra.mxu0 %v789
        %v1151 = vpop.f32.mrf.mxu0
        %v1152 = vadd.f32 0.0, %v1151
        %v1153 = vpop.f32.mrf.mxu0
        %v1154 = vadd.f32 0.0, %v1153
        %1155 = vmatmul.bf16.gmra.mxu0 %v791
        %v1156 = vpop.f32.mrf.mxu0
        %v1157 = vadd.f32 0.0, %v1156
        %v1158 = vpop.f32.mrf.mxu0
        %1159 = vmatmul.bf16.gmra.mxu0 %v793
        %v1160 = vpop.f32.mrf.mxu0
        %v1161 = vadd.f32 0.0, %v1160
        %v1162 = vpop.f32.mrf.mxu0
        %v1163 = vadd.f32 0.0, %v1162
        %1164 = vmatmul.bf16.gmra.mxu0 %v795
        %v1165 = vpop.f32.mrf.mxu0
        %v1166 = vadd.f32 0.0, %v1165
        %v1167 = vpop.f32.mrf.mxu0
        %1168 = vmatmul.bf16.gmra.mxu0 %v797
        %v1169 = vpop.f32.mrf.mxu0
        %v1170 = vadd.f32 0.0, %v1169
        %v1171 = vpop.f32.mrf.mxu0
        %v1172 = vadd.f32 0.0, %v1171
        %1173 = vmatmul.bf16.gmra.mxu0 %v799
        %v1174 = vpop.f32.mrf.mxu0
        %v1175 = vadd.f32 0.0, %v1174
        %v1176 = vpop.f32.mrf.mxu0
        %1177 = vdwg.mxu0
        %vm1202 = vcmask 1045504
        %v1203 = vrot.slane %v1107, 2
        %v1204 = vrot.slane %v1109, 2
        %v1205 = vsel %vm1202, %v1203, %v1204
        %v1206 = vrot.slane %v1112, 2
        %v1207 = vsel %vm1202, %v1204, %v1206
        %v1208 = vrot.slane %v1116, 2
        %v1209 = vrot.slane %v1118, 2
        %v1210 = vsel %vm1202, %v1208, %v1209
        %v1211 = vrot.slane %v1121, 2
        %v1212 = vsel %vm1202, %v1209, %v1211
        %v1213 = vrot.slane %v1125, 2
        %v1214 = vrot.slane %v1127, 2
        %v1215 = vsel %vm1202, %v1213, %v1214
        %v1216 = vrot.slane %v1130, 2
        %v1217 = vsel %vm1202, %v1214, %v1216
        %v1218 = vrot.slane %v1134, 2
        %v1219 = vrot.slane %v1136, 2
        %v1220 = vsel %vm1202, %v1218, %v1219
        %v1221 = vrot.slane %v1139, 2
        %v1222 = vsel %vm1202, %v1219, %v1221
        %v1223 = vrot.slane %v1143, 2
        %v1224 = vrot.slane %v1145, 2
        %v1225 = vsel %vm1202, %v1223, %v1224
        %v1226 = vrot.slane %v1148, 2
        %v1227 = vsel %vm1202, %v1224, %v1226
        %v1228 = vrot.slane %v1152, 2
        %v1229 = vrot.slane %v1154, 2
        %v1230 = vsel %vm1202, %v1228, %v1229
        %v1231 = vrot.slane %v1157, 2
        %v1232 = vsel %vm1202, %v1229, %v1231
        %v1233 = vrot.slane %v1161, 2
        %v1234 = vrot.slane %v1163, 2
        %v1235 = vsel %vm1202, %v1233, %v1234
        %v1236 = vrot.slane %v1166, 2
        %v1237 = vsel %vm1202, %v1234, %v1236
        %v1238 = vrot.slane %v1170, 2
        %v1239 = vrot.slane %v1172, 2
        %v1240 = vsel %vm1202, %v1238, %v1239
        %v1241 = vrot.slane %v1175, 2
        %v1242 = vsel %vm1202, %v1239, %v1241
        %v1259 = vadd.f32 %v1070, %v1205
        %v1260 = vadd.f32 %v1071, %v1207
        %v1261 = vadd.f32 %v1072, %v1210
        %v1262 = vadd.f32 %v1073, %v1212
        %v1263 = vadd.f32 %v1074, %v1215
        %v1264 = vadd.f32 %v1075, %v1217
        %v1265 = vadd.f32 %v1076, %v1220
        %v1266 = vadd.f32 %v1077, %v1222
        %v1267 = vadd.f32 %v1078, %v1225
        %v1268 = vadd.f32 %v1079, %v1227
        %v1269 = vadd.f32 %v1080, %v1230
        %v1270 = vadd.f32 %v1081, %v1232
        %v1271 = vadd.f32 %v1082, %v1235
        %v1272 = vadd.f32 %v1083, %v1237
        %v1273 = vadd.f32 %v1084, %v1240
        %v1274 = vadd.f32 %v1085, %v1242
        %v1275 = vld [vmem:[%s4] sm:$0x1]
        %v1277 = vperm.slane %v1275, 0
        %v1279 = vadd.f32 %v1259, %v1277
        %v1280 = vadd.f32 %v1260, %v1277
        %v1281 = vadd.f32 %v1261, %v1277
        %v1282 = vadd.f32 %v1262, %v1277
        %v1283 = vadd.f32 %v1263, %v1277
        %v1284 = vadd.f32 %v1264, %v1277
        %v1285 = vadd.f32 %v1265, %v1277
        %v1286 = vadd.f32 %v1266, %v1277
        %v1287 = vadd.f32 %v1267, %v1277
        %v1288 = vadd.f32 %v1268, %v1277
        %v1289 = vadd.f32 %v1269, %v1277
        %v1290 = vadd.f32 %v1270, %v1277
        %v1291 = vadd.f32 %v1271, %v1277
        %v1292 = vadd.f32 %v1272, %v1277
        %v1293 = vadd.f32 %v1273, %v1277
        %v1294 = vadd.f32 %v1274, %v1277
        %v1295 = vmax.f32 %v1279, 0.0
        %v1296 = vmax.f32 %v1280, 0.0
        %v1297 = vmax.f32 %v1281, 0.0
        %v1298 = vmax.f32 %v1282, 0.0
        %v1299 = vmax.f32 %v1283, 0.0
        %v1300 = vmax.f32 %v1284, 0.0
        %v1301 = vmax.f32 %v1285, 0.0
        %v1302 = vmax.f32 %v1286, 0.0
        %v1303 = vmax.f32 %v1287, 0.0
        %v1304 = vmax.f32 %v1288, 0.0
        %v1305 = vmax.f32 %v1289, 0.0
        %v1306 = vmax.f32 %v1290, 0.0
        %v1307 = vmax.f32 %v1291, 0.0
        %v1308 = vmax.f32 %v1292, 0.0
        %v1309 = vmax.f32 %v1293, 0.0
        %v1310 = vmax.f32 %v1294, 0.0
        %vm1311 = vcmask 523264
        %1312 = vst.msk [vmem:[%s334] sm:$0xff] %vm1311, %v1295
        %1313 = vst.msk [vmem:[%s334 + $0x8] sm:$0xff] %vm1311, %v1296
        %1314 = vst.msk [vmem:[%s334 + $0x10] sm:$0xff] %vm1311, %v1297
        %1315 = vst.msk [vmem:[%s334 + $0x18] sm:$0xff] %vm1311, %v1298
        %1316 = vst.msk [vmem:[%s334 + $0x20] sm:$0xff] %vm1311, %v1299
        %1317 = vst.msk [vmem:[%s334 + $0x28] sm:$0xff] %vm1311, %v1300
        %1318 = vst.msk [vmem:[%s334 + $0x30] sm:$0xff] %vm1311, %v1301
        %1319 = vst.msk [vmem:[%s334 + $0x38] sm:$0xff] %vm1311, %v1302
        %1320 = vst.msk [vmem:[%s334 + $0x40] sm:$0xff] %vm1311, %v1303
        %1321 = vst.msk [vmem:[%s334 + $0x48] sm:$0xff] %vm1311, %v1304
        %1322 = vst.msk [vmem:[%s334 + $0x50] sm:$0xff] %vm1311, %v1305
        %1323 = vst.msk [vmem:[%s334 + $0x58] sm:$0xff] %vm1311, %v1306
        %1324 = vst.msk [vmem:[%s334 + $0x60] sm:$0xff] %vm1311, %v1307
        %1325 = vst.msk [vmem:[%s334 + $0x68] sm:$0xff] %vm1311, %v1308
        %1326 = vst.msk [vmem:[%s334 + $0x70] sm:$0xff] %vm1311, %v1309
        %1327 = vst.msk [vmem:[%s334 + $0x78] sm:$0xff] %vm1311, %v1310
        %s1328 = sand.u32 %s183, 1
        %s1329 = scalar_lea.sflag [#allocation3], %s1328
        %s1330 = sand.u32 %s183, 1
        %s1331 = smul.addr %s1330, 128
        %s1332 = scalar_lea.vmem [#allocation2], %s1331
        // Predicated region
        $region41: #{tpu_custom_call.1} parent=39 // pred_check
          %p1333 = pneg %p193
        $region42: #{tpu_custom_call.1} parent=39 // pred_check_branch
          %1335 = sbr.rel (%p1333) target = $region44
        $region43: #{tpu_custom_call.1} parent=39 // pred_region
          %s1336 = smul.u32 8, %s24
          %1338 = vsyncadd %s1329, 0
          %s1339 = smul.addr %s1336, 2
          %s1340 = smul.addr %s23, 32
          %s1341 = sadd.s32 %s1339, %s1340
          %s1342 = smul.addr %s1341, 8
          %s1343 = scalar_lea.hbm %s5, %s1342
          %s1344 = sshll.u32 %s1332, 4
          %s1345 = int_to_ptr.vmem [resolvable:$true] %s1344
          %s1346 = sshll.u32 %s1343, 4
          %s1347 = int_to_ptr.hbm [resolvable:$true] %s1346
          %1352 = dma.vmem_to_hbm [thread:$0]  %s1345, 2048, %s1347, %s1329, 128, 128, 8
        $region44: #{tpu_custom_call.1} parent=39 // pred_fallthru
          _
      $region40: #{tpu_custom_call.1} parent=5 // pred_fallthru
        _
      %p1353 = scmp.le.s32.totalorder 2, %s14
      // Predicated region
      $region45: #{tpu_custom_call.1} parent=5 // pred_check
        %p1354 = pneg %p1353
      $region46: #{tpu_custom_call.1} parent=5 // pred_check_branch
        %1356 = sbr.rel (%p1354) target = $region48
      $region47: #{tpu_custom_call.1} parent=5 // pred_region
        %s1357 = ssub.s32 %s14, 2
        // Predicated region
        $region49: #{tpu_custom_call.1} parent=47 // pred_check
          %p1358 = pneg %p199
        $region50: #{tpu_custom_call.1} parent=47 // pred_check_branch
          %1360 = sbr.rel (%p1358) target = $region52
        $region51: #{tpu_custom_call.1} parent=47 // pred_region
          %s1361 = sand.u32 %s184, 1
          %s1362 = scalar_lea.sflag [#allocation3], %s1361
          %s1363 = sand.u32 %s184, 1
          %s1364 = smul.addr %s1363, 128
          %s1365 = scalar_lea.vmem [#allocation2], %s1364
          %1367 = dma.done %s1362, 2048
        $region52: #{tpu_custom_call.1} parent=47 // pred_fallthru
          _
      $region48: #{tpu_custom_call.1} parent=5 // pred_fallthru
        _
    $region6: #{tpu_custom_call.1} parent=1 // loop_footer
      %s18 = sadd.s32 1, %s14
    $region7: #{tpu_custom_call.1} parent=1 // loop_footer_branch
      %13 = sbr.rel target = $region3
    $region8: #{tpu_custom_call.1} parent=1 // loop_exit
      _
    %1368 = vsyncpa [#allocation3], 1
    %s1369 = scalar_lea.sflag [#allocation3], 1
    %1370 = vsyncpa %s1369, 1

</llo_original>
